<compile_context>
chip_gen: v7x
topology: tpu7x:2x2x1
jax: 0.10.0
libtpu: 0.0.40
codegen_flags: <defaults>
</compile_context>

<pallas_src>
import functools

import jax
import jax.numpy as jnp
from jax import lax
from jax.experimental import pallas as pl
from jax.experimental.pallas import tpu as pltpu


def _multibox_fused_kernel(threshold, variances,
                           targets_ref, prows_ref, conf_ref, loc_ref,
                           ce_ref, pos_ref, sl1_ref):
    """Per-batch SSD match + encode + SmoothL1(pos) + per-prior CE.

    Shapes (per grid step, P lane-dense):
      targets_ref : [1, J, 5]   (x1, y1, x2, y2, label)
      prows_ref   : [8, P]      (x1, y1, x2, y2, cx, cy, w, h)
      conf_ref    : [1, C, P]
      loc_ref     : [1, 4, P]   (dcx, dcy, dw, dh)
      ce_ref      : [1, 1, P]   per-prior cross entropy (unmasked)
      pos_ref     : [1, 1, P]   positive mask (float)
      sl1_ref     : [1, 1, P]   SmoothL1 summed over 4 coords, masked to positives
    """
    v0, v1 = variances
    J = targets_ref.shape[1]
    C = conf_ref.shape[1]
    P = conf_ref.shape[2]

    t = targets_ref[0]                       # [J, 5]
    truths_x1 = t[:, 0:1]                    # [J, 1]
    truths_y1 = t[:, 1:2]
    truths_x2 = t[:, 2:3]
    truths_y2 = t[:, 3:4]
    labels = t[:, 4:5]                       # [J, 1]

    pr = prows_ref[...]                      # [8, P]
    px1 = pr[0:1, :]; py1 = pr[1:2, :]; px2 = pr[2:3, :]; py2 = pr[3:4, :]
    pcx = pr[4:5, :]; pcy = pr[5:6, :]; pw = pr[6:7, :]; ph = pr[7:8, :]

    conf = conf_ref[0]                       # [C, P]
    loc = loc_ref[0]                         # [4, P]

    # ---- pairwise IoU (jaccard) between GT boxes and priors: [J, P] ----
    ix1 = jnp.maximum(truths_x1, px1); iy1 = jnp.maximum(truths_y1, py1)
    ix2 = jnp.minimum(truths_x2, px2); iy2 = jnp.minimum(truths_y2, py2)
    inter = jnp.maximum(ix2 - ix1, 0.0) * jnp.maximum(iy2 - iy1, 0.0)
    area_t = (truths_x2 - truths_x1) * (truths_y2 - truths_y1)       # [J, 1]
    area_p = (px2 - px1) * (py2 - py1)                               # [1, P]
    union = jnp.maximum(area_t + area_p - inter, 1e-10)              # eps: degenerate boxes
    overlaps = inter * pl.reciprocal(union, approx=True)             # EUP, ~free

    # ---- best prior per GT (argmax over lanes, first occurrence) ----
    iota_p = lax.broadcasted_iota(jnp.int32, (J, P), 1)
    bp_val = jnp.max(overlaps, axis=1, keepdims=True)                # [J, 1]
    bp_idx = jnp.min(jnp.where(overlaps >= bp_val, iota_p, P),
                     axis=1, keepdims=True)                          # [J, 1]

    # ---- best GT per prior (argmax over sublanes, first occurrence) ----
    iota_j = lax.broadcasted_iota(jnp.int32, (J, P), 0)
    bt_val = jnp.max(overlaps, axis=0, keepdims=True)                # [1, P]
    bt_idx = jnp.min(jnp.where(overlaps >= bt_val, iota_j, J),
                     axis=0, keepdims=True)                          # [1, P]

    # ---- force-match: each GT keeps its best prior (overlap := 2, idx := j; last j wins) ----
    match_mask = (bp_idx == iota_p).astype(jnp.int32)                # [J, P]
    forced = jnp.max(match_mask, axis=0, keepdims=True)              # [1, P]
    forced_idx = jnp.max(jnp.where(match_mask > 0, iota_j, -1),
                         axis=0, keepdims=True)                      # [1, P]
    bt_val = jnp.where(forced > 0, 2.0, bt_val)
    bt_idx = jnp.where(forced > 0, forced_idx, bt_idx)

    # ---- gather matched GT coords / label: per-coordinate sublane reductions ----
    onehot_j = (bt_idx == iota_j).astype(jnp.float32)                # [J, P]

    def gather(col):                                                 # col: [J, 1] -> [1, P]
        return jnp.sum(onehot_j * col, axis=0, keepdims=True)

    mx1 = gather(truths_x1); my1 = gather(truths_y1)
    mx2 = gather(truths_x2); my2 = gather(truths_y2)
    matched_lab = gather(labels)                                     # [1, P]

    conf_t = (matched_lab + 1.0).astype(jnp.int32)                   # [1, P]
    conf_t = jnp.where(bt_val < threshold, 0, conf_t)
    pos = conf_t > 0                                                 # [1, P]

    # ---- encode matched boxes vs priors (SSD offsets with variances) ----
    m_cx = (mx1 + mx2) * 0.5
    m_cy = (my1 + my2) * 0.5
    m_w = jnp.maximum(mx2 - mx1, 1e-6)   # clamp: padded / degenerate GT -> finite log
    m_h = jnp.maximum(my2 - my1, 1e-6)
    g_cx = (m_cx - pcx) / (v0 * pw)
    g_cy = (m_cy - pcy) / (v0 * ph)
    g_w = jnp.log(m_w / pw) / v1
    g_h = jnp.log(m_h / ph) / v1

    # ---- SmoothL1 (beta=1) summed over the 4 coords, selected (not multiplied) on pos ----
    def smooth_l1(pred, tgt):
        d = jnp.abs(pred - tgt)
        return jnp.where(d < 1.0, 0.5 * d * d, d - 0.5)

    sl1_sum = (smooth_l1(loc[0:1, :], g_cx) + smooth_l1(loc[1:2, :], g_cy)
               + smooth_l1(loc[2:3, :], g_w) + smooth_l1(loc[3:4, :], g_h))   # [1, P]
    sl1_pos = jnp.where(pos, sl1_sum, 0.0)

    # ---- per-prior cross entropy (logsumexp - logit[target]) over C on sublanes ----
    cmax = jnp.max(conf, axis=0, keepdims=True)                      # [1, P]
    lse = jnp.log(jnp.sum(jnp.exp(conf - cmax), axis=0, keepdims=True)) + cmax
    iota_c = lax.broadcasted_iota(jnp.int32, (C, P), 0)
    gathered = jnp.sum(jnp.where(conf_t == iota_c, conf, 0.0),
                       axis=0, keepdims=True)                        # [1, P]
    ce = lse - gathered

    ce_ref[0] = ce
    pos_ref[0] = pos.astype(jnp.float32)
    sl1_ref[0] = sl1_pos


def multibox_loss(loc_data, conf_data, truths, labels, priors,
                  overlap_thresh=0.5, neg_pos_ratio=3, loc_weight=1.0,
                  variance=(0.1, 0.2)):
    """loc_data [B,P,4], conf_data [B,P,C], truths [B,J,4] xyxy, labels [B,J] class ids
    (background 0 added inside matching), priors [P,4] (cx,cy,w,h). Returns (loss_l, loss_c)."""
    B, P, C = conf_data.shape
    J = truths.shape[1]

    # priors as 8 lane-dense rows: x1,y1,x2,y2,cx,cy,w,h
    cx, cy, w, h = priors[:, 0], priors[:, 1], priors[:, 2], priors[:, 3]
    prows = jnp.stack([cx - w * 0.5, cy - h * 0.5, cx + w * 0.5, cy + h * 0.5,
                       cx, cy, w, h], axis=0).astype(jnp.float32)            # [8, P]

    # layout plumbing (wrapper-side): P becomes the lane axis of every kernel operand
    targets = jnp.concatenate(
        [truths, labels[..., None]], axis=2).astype(jnp.float32)             # [B, J, 5]
    conf_cp = jnp.transpose(conf_data, (0, 2, 1)).astype(jnp.float32)        # [B, C, P]
    loc_cp = jnp.transpose(loc_data, (0, 2, 1)).astype(jnp.float32)          # [B, 4, P]

    out_spec = pl.BlockSpec((1, 1, P), lambda b: (b, 0, 0))
    ce, pos_f, sl1_pos = pl.pallas_call(
        functools.partial(_multibox_fused_kernel, float(overlap_thresh),
                          (float(variance[0]), float(variance[1]))),
        out_shape=(jax.ShapeDtypeStruct((B, 1, P), jnp.float32),   # per-prior CE
                   jax.ShapeDtypeStruct((B, 1, P), jnp.float32),   # positive mask
                   jax.ShapeDtypeStruct((B, 1, P), jnp.float32)),  # SmoothL1 (pos only)
        grid=(B,),
        in_specs=[pl.BlockSpec((1, J, 5), lambda b: (b, 0, 0)),
                  pl.BlockSpec((8, P), lambda b: (0, 0)),
                  pl.BlockSpec((1, C, P), lambda b: (b, 0, 0)),
                  pl.BlockSpec((1, 4, P), lambda b: (b, 0, 0))],
        out_specs=(out_spec, out_spec, out_spec),
        compiler_params=pltpu.CompilerParams(dimension_semantics=("parallel",)),
    )(targets, prows, conf_cp, loc_cp)

    ce = ce[:, 0, :]            # [B, P]
    pos_f = pos_f[:, 0, :]      # [B, P]
    sl1_pos = sl1_pos[:, 0, :]  # [B, P]

    # ---- hard negative mining: one descending sort + threshold (plain JAX glue) ----
    num_pos = jnp.sum(pos_f, axis=1, keepdims=True)                          # [B, 1]
    mine = ce * (1.0 - pos_f)                                                # CE zeroed on pos
    num_neg = jnp.minimum(neg_pos_ratio * num_pos, float(P - 1))             # [B, 1]
    sorted_desc = -jnp.sort(-mine, axis=1)                                   # [B, P] descending
    k = jnp.clip(num_neg.astype(jnp.int32) - 1, 0, P - 1)                    # num_neg-th largest
    thr = jnp.take_along_axis(sorted_desc, k, axis=1)                        # [B, 1]
    neg_f = jnp.where((mine >= thr) & (num_neg > 0) & (pos_f == 0.0), 1.0, 0.0)

    # ---- final reductions ----
    n = jnp.sum(pos_f)                        # N = number of matched (positive) priors
    denom = jnp.maximum(n, 1.0)               # avoid 0-div NaN; masked below anyway
    loss_l = jnp.sum(sl1_pos) * loc_weight
    loss_c = jnp.sum(ce * pos_f) + jnp.sum(mine * neg_f)
    loss_l = jnp.where(n > 0, loss_l / denom, 0.0)
    loss_c = jnp.where(n > 0, loss_c / denom, 0.0)
    return loss_l, loss_c


if __name__ == "__main__":
    B, P, C, J = 2, 256, 8, 8   # batch, num_priors, num_classes (incl. background), num_objs
    key = jax.random.PRNGKey(0)
    k1, k2, k3, k4, k5, k6, k7 = jax.random.split(key, 7)

    # deterministic synthetic priors (cx, cy, w, h) in [0, 1]
    cxy = jax.random.uniform(k1, (P, 2), minval=0.05, maxval=0.95)
    pwh = jax.random.uniform(k2, (P, 2), minval=0.05, maxval=0.30)
    priors = jnp.concatenate([cxy, pwh], axis=1).astype(jnp.float32)

    # deterministic synthetic ground truth boxes (xyxy) and labels
    xy1 = jax.random.uniform(k3, (B, J, 2), minval=0.0, maxval=0.6)
    gwh = jax.random.uniform(k4, (B, J, 2), minval=0.10, maxval=0.35)
    truths = jnp.concatenate([xy1, xy1 + gwh], axis=2).astype(jnp.float32)
    labels = jax.random.randint(k5, (B, J), 0, C - 1).astype(jnp.float32)   # 0..C-2

    # predictions
    loc_data = (0.1 * jax.random.normal(k6, (B, P, 4))).astype(jnp.float32)
    conf_data = jax.random.normal(k7, (B, P, C)).astype(jnp.float32)

    loss_l, loss_c = jax.jit(multibox_loss)(loc_data, conf_data, truths, labels, priors)
    jax.block_until_ready((loss_l, loss_c))
    print("KERNEL_OK")
</pallas_src>

<mosaic_0001>
module attributes {stable_mosaic.version = 11 : i64} {
  func.func @_multibox_fused_kernel(%arg0: i32, %arg1: memref<1x8x5xf32, #tpu.memory_space<vmem>>, %arg2: memref<8x256xf32, #tpu.memory_space<vmem>>, %arg3: memref<1x8x256xf32, #tpu.memory_space<vmem>>, %arg4: memref<1x4x256xf32, #tpu.memory_space<vmem>>, %arg5: memref<1x1x256xf32, #tpu.memory_space<vmem>>, %arg6: memref<1x1x256xf32, #tpu.memory_space<vmem>>, %arg7: memref<1x1x256xf32, #tpu.memory_space<vmem>>) attributes {dimension_semantics = [#tpu.dimension_semantics<parallel>], iteration_bounds = array<i64: 2>, scalar_prefetch = 0 : i64, scratch_operands = 0 : i64, tpu.core_type = #tpu.core_type<tc>, window_params = [{transform_indices = @transform_0, window_bounds = array<i64: 1, 8, 5>}, {pipeline_mode = #tpu.pipeline_mode<synchronous>, transform_indices = @transform_1, window_bounds = array<i64: 8, 256>}, {transform_indices = @transform_2, window_bounds = array<i64: 1, 8, 256>}, {transform_indices = @transform_3, window_bounds = array<i64: 1, 4, 256>}, {transform_indices = @transform_4, window_bounds = array<i64: 1, 1, 256>}, {transform_indices = @transform_5, window_bounds = array<i64: 1, 1, 256>}, {transform_indices = @transform_6, window_bounds = array<i64: 1, 1, 256>}]} {
    %c0 = arith.constant 0 : index
    %c0_0 = arith.constant 0 : index
    %c0_1 = arith.constant 0 : index
    %0 = vector.load %arg1[%c0, %c0_0, %c0_1] : memref<1x8x5xf32, #tpu.memory_space<vmem>>, vector<1x8x5xf32>
    %1 = vector.shape_cast %0 : vector<1x8x5xf32> to vector<8x5xf32>
    %2 = vector.extract_strided_slice %1 {offsets = [0, 0], sizes = [8, 1], strides = [1, 1]} : vector<8x5xf32> to vector<8x1xf32>
    %3 = vector.extract_strided_slice %1 {offsets = [0, 1], sizes = [8, 1], strides = [1, 1]} : vector<8x5xf32> to vector<8x1xf32>
    %4 = vector.extract_strided_slice %1 {offsets = [0, 2], sizes = [8, 1], strides = [1, 1]} : vector<8x5xf32> to vector<8x1xf32>
    %5 = vector.extract_strided_slice %1 {offsets = [0, 3], sizes = [8, 1], strides = [1, 1]} : vector<8x5xf32> to vector<8x1xf32>
    %6 = vector.extract_strided_slice %1 {offsets = [0, 4], sizes = [8, 1], strides = [1, 1]} : vector<8x5xf32> to vector<8x1xf32>
    %c0_2 = arith.constant 0 : index
    %c0_3 = arith.constant 0 : index
    %7 = vector.load %arg2[%c0_2, %c0_3] : memref<8x256xf32, #tpu.memory_space<vmem>>, vector<8x256xf32>
    %8 = vector.extract_strided_slice %7 {offsets = [0, 0], sizes = [1, 256], strides = [1, 1]} : vector<8x256xf32> to vector<1x256xf32>
    %9 = vector.extract_strided_slice %7 {offsets = [1, 0], sizes = [1, 256], strides = [1, 1]} : vector<8x256xf32> to vector<1x256xf32>
    %10 = vector.extract_strided_slice %7 {offsets = [2, 0], sizes = [1, 256], strides = [1, 1]} : vector<8x256xf32> to vector<1x256xf32>
    %11 = vector.extract_strided_slice %7 {offsets = [3, 0], sizes = [1, 256], strides = [1, 1]} : vector<8x256xf32> to vector<1x256xf32>
    %12 = vector.extract_strided_slice %7 {offsets = [4, 0], sizes = [1, 256], strides = [1, 1]} : vector<8x256xf32> to vector<1x256xf32>
    %13 = vector.extract_strided_slice %7 {offsets = [5, 0], sizes = [1, 256], strides = [1, 1]} : vector<8x256xf32> to vector<1x256xf32>
    %14 = vector.extract_strided_slice %7 {offsets = [6, 0], sizes = [1, 256], strides = [1, 1]} : vector<8x256xf32> to vector<1x256xf32>
    %15 = vector.extract_strided_slice %7 {offsets = [7, 0], sizes = [1, 256], strides = [1, 1]} : vector<8x256xf32> to vector<1x256xf32>
    %c0_4 = arith.constant 0 : index
    %c0_5 = arith.constant 0 : index
    %c0_6 = arith.constant 0 : index
    %16 = vector.load %arg3[%c0_4, %c0_5, %c0_6] : memref<1x8x256xf32, #tpu.memory_space<vmem>>, vector<1x8x256xf32>
    %17 = vector.shape_cast %16 : vector<1x8x256xf32> to vector<8x256xf32>
    %c0_7 = arith.constant 0 : index
    %c0_8 = arith.constant 0 : index
    %c0_9 = arith.constant 0 : index
    %18 = vector.load %arg4[%c0_7, %c0_8, %c0_9] : memref<1x4x256xf32, #tpu.memory_space<vmem>>, vector<1x4x256xf32>
    %19 = vector.shape_cast %18 : vector<1x4x256xf32> to vector<4x256xf32>
    %20 = vector.broadcast %2 : vector<8x1xf32> to vector<8x256xf32>
    %21 = vector.broadcast %8 : vector<1x256xf32> to vector<8x256xf32>
    %22 = arith.maximumf %20, %21 : vector<8x256xf32>
    %23 = vector.broadcast %3 : vector<8x1xf32> to vector<8x256xf32>
    %24 = vector.broadcast %9 : vector<1x256xf32> to vector<8x256xf32>
    %25 = arith.maximumf %23, %24 : vector<8x256xf32>
    %26 = vector.broadcast %4 : vector<8x1xf32> to vector<8x256xf32>
    %27 = vector.broadcast %10 : vector<1x256xf32> to vector<8x256xf32>
    %28 = arith.minimumf %26, %27 : vector<8x256xf32>
    %29 = vector.broadcast %5 : vector<8x1xf32> to vector<8x256xf32>
    %30 = vector.broadcast %11 : vector<1x256xf32> to vector<8x256xf32>
    %31 = arith.minimumf %29, %30 : vector<8x256xf32>
    %32 = arith.subf %28, %22 : vector<8x256xf32>
    %cst = arith.constant 0.000000e+00 : f32
    %33 = vector.broadcast %cst : f32 to vector<8x256xf32>
    %34 = arith.maximumf %32, %33 : vector<8x256xf32>
    %35 = arith.subf %31, %25 : vector<8x256xf32>
    %cst_10 = arith.constant 0.000000e+00 : f32
    %36 = vector.broadcast %cst_10 : f32 to vector<8x256xf32>
    %37 = arith.maximumf %35, %36 : vector<8x256xf32>
    %38 = arith.mulf %34, %37 : vector<8x256xf32>
    %39 = arith.subf %4, %2 : vector<8x1xf32>
    %40 = arith.subf %5, %3 : vector<8x1xf32>
    %41 = arith.mulf %39, %40 : vector<8x1xf32>
    %42 = arith.subf %10, %8 : vector<1x256xf32>
    %43 = arith.subf %11, %9 : vector<1x256xf32>
    %44 = arith.mulf %42, %43 : vector<1x256xf32>
    %45 = vector.broadcast %41 : vector<8x1xf32> to vector<8x256xf32>
    %46 = vector.broadcast %44 : vector<1x256xf32> to vector<8x256xf32>
    %47 = arith.addf %45, %46 : vector<8x256xf32>
    %48 = arith.subf %47, %38 : vector<8x256xf32>
    %cst_11 = arith.constant 1.000000e-10 : f32
    %49 = vector.broadcast %cst_11 : f32 to vector<8x256xf32>
    %50 = arith.maximumf %48, %49 : vector<8x256xf32>
    %51 = tpu.reciprocal %50 {approx = true} : vector<8x256xf32> -> vector<8x256xf32>
    %52 = arith.mulf %38, %51 : vector<8x256xf32>
    %53 = tpu.iota {dimensions = array<i32: 1>} : vector<8x256xi32>
    %cst_12 = arith.constant dense<0xFF800000> : vector<8xf32>
    %54 = vector.multi_reduction <maximumf>, %52, %cst_12 [1] : vector<8x256xf32> to vector<8xf32>
    %55 = vector.shape_cast %54 : vector<8xf32> to vector<8x1xf32>
    %56 = vector.broadcast %55 : vector<8x1xf32> to vector<8x256xf32>
    %57 = arith.cmpf oge, %52, %56 : vector<8x256xf32>
    %c256_i32 = arith.constant 256 : i32
    %58 = vector.broadcast %c256_i32 : i32 to vector<8x256xi32>
    %59 = arith.select %57, %53, %58 : vector<8x256xi1>, vector<8x256xi32>
    %cst_13 = arith.constant dense<2147483647> : vector<8xi32>
    %60 = vector.multi_reduction <minsi>, %59, %cst_13 [1] : vector<8x256xi32> to vector<8xi32>
    %61 = vector.shape_cast %60 : vector<8xi32> to vector<8x1xi32>
    %62 = tpu.iota {dimensions = array<i32: 0>} : vector<8x256xi32>
    %cst_14 = arith.constant dense<0xFF800000> : vector<256xf32>
    %63 = vector.multi_reduction <maximumf>, %52, %cst_14 [0] : vector<8x256xf32> to vector<256xf32>
    %64 = vector.shape_cast %63 : vector<256xf32> to vector<1x256xf32>
    %65 = vector.broadcast %64 : vector<1x256xf32> to vector<8x256xf32>
    %66 = arith.cmpf oge, %52, %65 : vector<8x256xf32>
    %c8_i32 = arith.constant 8 : i32
    %67 = vector.broadcast %c8_i32 : i32 to vector<8x256xi32>
    %68 = arith.select %66, %62, %67 : vector<8x256xi1>, vector<8x256xi32>
    %cst_15 = arith.constant dense<2147483647> : vector<256xi32>
    %69 = vector.multi_reduction <minsi>, %68, %cst_15 [0] : vector<8x256xi32> to vector<256xi32>
    %70 = vector.shape_cast %69 : vector<256xi32> to vector<1x256xi32>
    %71 = vector.broadcast %61 : vector<8x1xi32> to vector<8x256xi32>
    %72 = arith.cmpi eq, %71, %53 : vector<8x256xi32>
    %73 = arith.extui %72 : vector<8x256xi1> to vector<8x256xi32>
    %cst_16 = arith.constant dense<-2147483648> : vector<256xi32>
    %74 = vector.multi_reduction <maxsi>, %73, %cst_16 [0] : vector<8x256xi32> to vector<256xi32>
    %75 = vector.shape_cast %74 : vector<256xi32> to vector<1x256xi32>
    %c0_i32 = arith.constant 0 : i32
    %76 = vector.broadcast %c0_i32 : i32 to vector<8x256xi32>
    %77 = arith.cmpi sgt, %73, %76 : vector<8x256xi32>
    %c-1_i32 = arith.constant -1 : i32
    %78 = vector.broadcast %c-1_i32 : i32 to vector<8x256xi32>
    %79 = arith.select %77, %62, %78 : vector<8x256xi1>, vector<8x256xi32>
    %cst_17 = arith.constant dense<-2147483648> : vector<256xi32>
    %80 = vector.multi_reduction <maxsi>, %79, %cst_17 [0] : vector<8x256xi32> to vector<256xi32>
    %81 = vector.shape_cast %80 : vector<256xi32> to vector<1x256xi32>
    %c0_i32_18 = arith.constant 0 : i32
    %82 = vector.broadcast %c0_i32_18 : i32 to vector<1x256xi32>
    %83 = arith.cmpi sgt, %75, %82 : vector<1x256xi32>
    %cst_19 = arith.constant 2.000000e+00 : f32
    %84 = vector.broadcast %cst_19 : f32 to vector<1x256xf32>
    %85 = arith.select %83, %84, %64 : vector<1x256xi1>, vector<1x256xf32>
    %c0_i32_20 = arith.constant 0 : i32
    %86 = vector.broadcast %c0_i32_20 : i32 to vector<1x256xi32>
    %87 = arith.cmpi sgt, %75, %86 : vector<1x256xi32>
    %88 = arith.select %87, %81, %70 : vector<1x256xi1>, vector<1x256xi32>
    %89 = vector.broadcast %88 : vector<1x256xi32> to vector<8x256xi32>
    %90 = arith.cmpi eq, %89, %62 : vector<8x256xi32>
    %91 = arith.extui %90 : vector<8x256xi1> to vector<8x256xi32>
    %92 = arith.sitofp %91 : vector<8x256xi32> to vector<8x256xf32>
    %93 = vector.broadcast %2 : vector<8x1xf32> to vector<8x256xf32>
    %94 = arith.mulf %92, %93 : vector<8x256xf32>
    %cst_21 = arith.constant dense<0.000000e+00> : vector<256xf32>
    %95 = vector.multi_reduction <add>, %94, %cst_21 [0] : vector<8x256xf32> to vector<256xf32>
    %96 = vector.shape_cast %95 : vector<256xf32> to vector<1x256xf32>
    %97 = vector.broadcast %3 : vector<8x1xf32> to vector<8x256xf32>
    %98 = arith.mulf %92, %97 : vector<8x256xf32>
    %cst_22 = arith.constant dense<0.000000e+00> : vector<256xf32>
    %99 = vector.multi_reduction <add>, %98, %cst_22 [0] : vector<8x256xf32> to vector<256xf32>
    %100 = vector.shape_cast %99 : vector<256xf32> to vector<1x256xf32>
    %101 = vector.broadcast %4 : vector<8x1xf32> to vector<8x256xf32>
    %102 = arith.mulf %92, %101 : vector<8x256xf32>
    %cst_23 = arith.constant dense<0.000000e+00> : vector<256xf32>
    %103 = vector.multi_reduction <add>, %102, %cst_23 [0] : vector<8x256xf32> to vector<256xf32>
    %104 = vector.shape_cast %103 : vector<256xf32> to vector<1x256xf32>
    %105 = vector.broadcast %5 : vector<8x1xf32> to vector<8x256xf32>
    %106 = arith.mulf %92, %105 : vector<8x256xf32>
    %cst_24 = arith.constant dense<0.000000e+00> : vector<256xf32>
    %107 = vector.multi_reduction <add>, %106, %cst_24 [0] : vector<8x256xf32> to vector<256xf32>
    %108 = vector.shape_cast %107 : vector<256xf32> to vector<1x256xf32>
    %109 = vector.broadcast %6 : vector<8x1xf32> to vector<8x256xf32>
    %110 = arith.mulf %92, %109 : vector<8x256xf32>
    %cst_25 = arith.constant dense<0.000000e+00> : vector<256xf32>
    %111 = vector.multi_reduction <add>, %110, %cst_25 [0] : vector<8x256xf32> to vector<256xf32>
    %112 = vector.shape_cast %111 : vector<256xf32> to vector<1x256xf32>
    %cst_26 = arith.constant 1.000000e+00 : f32
    %113 = vector.broadcast %cst_26 : f32 to vector<1x256xf32>
    %114 = arith.addf %112, %113 : vector<1x256xf32>
    %115 = arith.fptosi %114 : vector<1x256xf32> to vector<1x256xi32>
    %cst_27 = arith.constant 5.000000e-01 : f32
    %116 = vector.broadcast %cst_27 : f32 to vector<1x256xf32>
    %117 = arith.cmpf olt, %85, %116 : vector<1x256xf32>
    %c0_i32_28 = arith.constant 0 : i32
    %118 = vector.broadcast %c0_i32_28 : i32 to vector<1x256xi32>
    %119 = arith.select %117, %118, %115 : vector<1x256xi1>, vector<1x256xi32>
    %c0_i32_29 = arith.constant 0 : i32
    %120 = vector.broadcast %c0_i32_29 : i32 to vector<1x256xi32>
    %121 = arith.cmpi sgt, %119, %120 : vector<1x256xi32>
    %122 = arith.addf %96, %104 : vector<1x256xf32>
    %cst_30 = arith.constant 5.000000e-01 : f32
    %123 = vector.broadcast %cst_30 : f32 to vector<1x256xf32>
    %124 = arith.mulf %122, %123 : vector<1x256xf32>
    %125 = arith.addf %100, %108 : vector<1x256xf32>
    %cst_31 = arith.constant 5.000000e-01 : f32
    %126 = vector.broadcast %cst_31 : f32 to vector<1x256xf32>
    %127 = arith.mulf %125, %126 : vector<1x256xf32>
    %128 = arith.subf %104, %96 : vector<1x256xf32>
    %cst_32 = arith.constant 9.99999997E-7 : f32
    %129 = vector.broadcast %cst_32 : f32 to vector<1x256xf32>
    %130 = arith.maximumf %128, %129 : vector<1x256xf32>
    %131 = arith.subf %108, %100 : vector<1x256xf32>
    %cst_33 = arith.constant 9.99999997E-7 : f32
    %132 = vector.broadcast %cst_33 : f32 to vector<1x256xf32>
    %133 = arith.maximumf %131, %132 : vector<1x256xf32>
    %134 = arith.subf %124, %12 : vector<1x256xf32>
    %cst_34 = arith.constant 1.000000e-01 : f32
    %135 = vector.broadcast %cst_34 : f32 to vector<1x256xf32>
    %136 = arith.mulf %135, %14 : vector<1x256xf32>
    %137 = arith.divf %134, %136 : vector<1x256xf32>
    %138 = arith.subf %127, %13 : vector<1x256xf32>
    %cst_35 = arith.constant 1.000000e-01 : f32
    %139 = vector.broadcast %cst_35 : f32 to vector<1x256xf32>
    %140 = arith.mulf %139, %15 : vector<1x256xf32>
    %141 = arith.divf %138, %140 : vector<1x256xf32>
    %142 = arith.divf %130, %14 : vector<1x256xf32>
    %143 = math.log %142 : vector<1x256xf32>
    %cst_36 = arith.constant 2.000000e-01 : f32
    %144 = vector.broadcast %cst_36 : f32 to vector<1x256xf32>
    %145 = arith.divf %143, %144 : vector<1x256xf32>
    %146 = arith.divf %133, %15 : vector<1x256xf32>
    %147 = math.log %146 : vector<1x256xf32>
    %cst_37 = arith.constant 2.000000e-01 : f32
    %148 = vector.broadcast %cst_37 : f32 to vector<1x256xf32>
    %149 = arith.divf %147, %148 : vector<1x256xf32>
    %150 = vector.extract_strided_slice %19 {offsets = [0, 0], sizes = [1, 256], strides = [1, 1]} : vector<4x256xf32> to vector<1x256xf32>
    %151 = arith.subf %150, %137 : vector<1x256xf32>
    %152 = math.absf %151 : vector<1x256xf32>
    %cst_38 = arith.constant 1.000000e+00 : f32
    %153 = vector.broadcast %cst_38 : f32 to vector<1x256xf32>
    %154 = arith.cmpf olt, %152, %153 : vector<1x256xf32>
    %cst_39 = arith.constant 5.000000e-01 : f32
    %155 = vector.broadcast %cst_39 : f32 to vector<1x256xf32>
    %156 = arith.mulf %155, %152 : vector<1x256xf32>
    %157 = arith.mulf %156, %152 : vector<1x256xf32>
    %cst_40 = arith.constant 5.000000e-01 : f32
    %158 = vector.broadcast %cst_40 : f32 to vector<1x256xf32>
    %159 = arith.subf %152, %158 : vector<1x256xf32>
    %160 = arith.select %154, %157, %159 : vector<1x256xi1>, vector<1x256xf32>
    %161 = vector.extract_strided_slice %19 {offsets = [1, 0], sizes = [1, 256], strides = [1, 1]} : vector<4x256xf32> to vector<1x256xf32>
    %162 = arith.subf %161, %141 : vector<1x256xf32>
    %163 = math.absf %162 : vector<1x256xf32>
    %cst_41 = arith.constant 1.000000e+00 : f32
    %164 = vector.broadcast %cst_41 : f32 to vector<1x256xf32>
    %165 = arith.cmpf olt, %163, %164 : vector<1x256xf32>
    %cst_42 = arith.constant 5.000000e-01 : f32
    %166 = vector.broadcast %cst_42 : f32 to vector<1x256xf32>
    %167 = arith.mulf %166, %163 : vector<1x256xf32>
    %168 = arith.mulf %167, %163 : vector<1x256xf32>
    %cst_43 = arith.constant 5.000000e-01 : f32
    %169 = vector.broadcast %cst_43 : f32 to vector<1x256xf32>
    %170 = arith.subf %163, %169 : vector<1x256xf32>
    %171 = arith.select %165, %168, %170 : vector<1x256xi1>, vector<1x256xf32>
    %172 = arith.addf %160, %171 : vector<1x256xf32>
    %173 = vector.extract_strided_slice %19 {offsets = [2, 0], sizes = [1, 256], strides = [1, 1]} : vector<4x256xf32> to vector<1x256xf32>
    %174 = arith.subf %173, %145 : vector<1x256xf32>
    %175 = math.absf %174 : vector<1x256xf32>
    %cst_44 = arith.constant 1.000000e+00 : f32
    %176 = vector.broadcast %cst_44 : f32 to vector<1x256xf32>
    %177 = arith.cmpf olt, %175, %176 : vector<1x256xf32>
    %cst_45 = arith.constant 5.000000e-01 : f32
    %178 = vector.broadcast %cst_45 : f32 to vector<1x256xf32>
    %179 = arith.mulf %178, %175 : vector<1x256xf32>
    %180 = arith.mulf %179, %175 : vector<1x256xf32>
    %cst_46 = arith.constant 5.000000e-01 : f32
    %181 = vector.broadcast %cst_46 : f32 to vector<1x256xf32>
    %182 = arith.subf %175, %181 : vector<1x256xf32>
    %183 = arith.select %177, %180, %182 : vector<1x256xi1>, vector<1x256xf32>
    %184 = arith.addf %172, %183 : vector<1x256xf32>
    %185 = vector.extract_strided_slice %19 {offsets = [3, 0], sizes = [1, 256], strides = [1, 1]} : vector<4x256xf32> to vector<1x256xf32>
    %186 = arith.subf %185, %149 : vector<1x256xf32>
    %187 = math.absf %186 : vector<1x256xf32>
    %cst_47 = arith.constant 1.000000e+00 : f32
    %188 = vector.broadcast %cst_47 : f32 to vector<1x256xf32>
    %189 = arith.cmpf olt, %187, %188 : vector<1x256xf32>
    %cst_48 = arith.constant 5.000000e-01 : f32
    %190 = vector.broadcast %cst_48 : f32 to vector<1x256xf32>
    %191 = arith.mulf %190, %187 : vector<1x256xf32>
    %192 = arith.mulf %191, %187 : vector<1x256xf32>
    %cst_49 = arith.constant 5.000000e-01 : f32
    %193 = vector.broadcast %cst_49 : f32 to vector<1x256xf32>
    %194 = arith.subf %187, %193 : vector<1x256xf32>
    %195 = arith.select %189, %192, %194 : vector<1x256xi1>, vector<1x256xf32>
    %196 = arith.addf %184, %195 : vector<1x256xf32>
    %cst_50 = arith.constant 0.000000e+00 : f32
    %197 = vector.broadcast %cst_50 : f32 to vector<1x256xf32>
    %198 = arith.select %121, %196, %197 : vector<1x256xi1>, vector<1x256xf32>
    %cst_51 = arith.constant dense<0xFF800000> : vector<256xf32>
    %199 = vector.multi_reduction <maximumf>, %17, %cst_51 [0] : vector<8x256xf32> to vector<256xf32>
    %200 = vector.shape_cast %199 : vector<256xf32> to vector<1x256xf32>
    %201 = vector.broadcast %200 : vector<1x256xf32> to vector<8x256xf32>
    %202 = arith.subf %17, %201 : vector<8x256xf32>
    %203 = math.exp %202 : vector<8x256xf32>
    %cst_52 = arith.constant dense<0.000000e+00> : vector<256xf32>
    %204 = vector.multi_reduction <add>, %203, %cst_52 [0] : vector<8x256xf32> to vector<256xf32>
    %205 = vector.shape_cast %204 : vector<256xf32> to vector<1x256xf32>
    %206 = math.log %205 : vector<1x256xf32>
    %207 = arith.addf %206, %200 : vector<1x256xf32>
    %208 = tpu.iota {dimensions = array<i32: 0>} : vector<8x256xi32>
    %209 = vector.broadcast %119 : vector<1x256xi32> to vector<8x256xi32>
    %210 = arith.cmpi eq, %209, %208 : vector<8x256xi32>
    %cst_53 = arith.constant 0.000000e+00 : f32
    %211 = vector.broadcast %cst_53 : f32 to vector<8x256xf32>
    %212 = arith.select %210, %17, %211 : vector<8x256xi1>, vector<8x256xf32>
    %cst_54 = arith.constant dense<0.000000e+00> : vector<256xf32>
    %213 = vector.multi_reduction <add>, %212, %cst_54 [0] : vector<8x256xf32> to vector<256xf32>
    %214 = vector.shape_cast %213 : vector<256xf32> to vector<1x256xf32>
    %215 = arith.subf %207, %214 : vector<1x256xf32>
    %c0_55 = arith.constant 0 : index
    %c0_56 = arith.constant 0 : index
    %c0_57 = arith.constant 0 : index
    %216 = vector.load %arg5[%c0_55, %c0_56, %c0_57] : memref<1x1x256xf32, #tpu.memory_space<vmem>>, vector<1x1x256xf32>
    %217 = vector.shape_cast %216 : vector<1x1x256xf32> to vector<1x256xf32>
    %218 = vector.shape_cast %215 : vector<1x256xf32> to vector<1x1x256xf32>
    tpu.vector_store %arg5[%c0_55, %c0_56, %c0_57], %218 {strides = array<i32>} : memref<1x1x256xf32, #tpu.memory_space<vmem>>, vector<1x1x256xf32>,
    %219 = arith.extui %121 : vector<1x256xi1> to vector<1x256xi32>
    %220 = arith.sitofp %219 : vector<1x256xi32> to vector<1x256xf32>
    %c0_58 = arith.constant 0 : index
    %c0_59 = arith.constant 0 : index
    %c0_60 = arith.constant 0 : index
    %221 = vector.load %arg6[%c0_58, %c0_59, %c0_60] : memref<1x1x256xf32, #tpu.memory_space<vmem>>, vector<1x1x256xf32>
    %222 = vector.shape_cast %221 : vector<1x1x256xf32> to vector<1x256xf32>
    %223 = vector.shape_cast %220 : vector<1x256xf32> to vector<1x1x256xf32>
    tpu.vector_store %arg6[%c0_58, %c0_59, %c0_60], %223 {strides = array<i32>} : memref<1x1x256xf32, #tpu.memory_space<vmem>>, vector<1x1x256xf32>,
    %c0_61 = arith.constant 0 : index
    %c0_62 = arith.constant 0 : index
    %c0_63 = arith.constant 0 : index
    %224 = vector.load %arg7[%c0_61, %c0_62, %c0_63] : memref<1x1x256xf32, #tpu.memory_space<vmem>>, vector<1x1x256xf32>
    %225 = vector.shape_cast %224 : vector<1x1x256xf32> to vector<1x256xf32>
    %226 = vector.shape_cast %198 : vector<1x256xf32> to vector<1x1x256xf32>
    tpu.vector_store %arg7[%c0_61, %c0_62, %c0_63], %226 {strides = array<i32>} : memref<1x1x256xf32, #tpu.memory_space<vmem>>, vector<1x1x256xf32>,
    return
  }
  func.func @transform_0(%arg0: i32) -> (i32, i32, i32) {
    %c0_i32 = arith.constant 0 : i32
    %c0_i32_0 = arith.constant 0 : i32
    %c0_i32_1 = arith.constant 0 : i32
    return %arg0, %c0_i32, %c0_i32_0 : i32, i32, i32
  }
  func.func @transform_1(%arg0: i32) -> (i32, i32) {
    %c0_i32 = arith.constant 0 : i32
    %c0_i32_0 = arith.constant 0 : i32
    %c0_i32_1 = arith.constant 0 : i32
    return %c0_i32, %c0_i32_0 : i32, i32
  }
  func.func @transform_2(%arg0: i32) -> (i32, i32, i32) {
    %c0_i32 = arith.constant 0 : i32
    %c0_i32_0 = arith.constant 0 : i32
    %c0_i32_1 = arith.constant 0 : i32
    return %arg0, %c0_i32, %c0_i32_0 : i32, i32, i32
  }
  func.func @transform_3(%arg0: i32) -> (i32, i32, i32) {
    %c0_i32 = arith.constant 0 : i32
    %c0_i32_0 = arith.constant 0 : i32
    %c0_i32_1 = arith.constant 0 : i32
    return %arg0, %c0_i32, %c0_i32_0 : i32, i32, i32
  }
  func.func @transform_4(%arg0: i32) -> (i32, i32, i32) {
    %c0_i32 = arith.constant 0 : i32
    %c0_i32_0 = arith.constant 0 : i32
    %c0_i32_1 = arith.constant 0 : i32
    return %arg0, %c0_i32, %c0_i32_0 : i32, i32, i32
  }
  func.func @transform_5(%arg0: i32) -> (i32, i32, i32) {
    %c0_i32 = arith.constant 0 : i32
    %c0_i32_0 = arith.constant 0 : i32
    %c0_i32_1 = arith.constant 0 : i32
    return %arg0, %c0_i32, %c0_i32_0 : i32, i32, i32
  }
  func.func @transform_6(%arg0: i32) -> (i32, i32, i32) {
    %c0_i32 = arith.constant 0 : i32
    %c0_i32_0 = arith.constant 0 : i32
    %c0_i32_1 = arith.constant 0 : i32
    return %arg0, %c0_i32, %c0_i32_0 : i32, i32, i32
  }
}

</mosaic_0001>

<llo_original>
// kernel: neg.3
$region0: #{neg.3}
  #allocation0 [shape = 's32[1]{0}', space=sflag, size = 0x4, scoped, tag = 'scoped memory for neg.3']
  %s0 = inlined_call_operand.vmem [shape: f32[2,256], index: 0, kind: input, shape index: {}]
  %s1 = inlined_call_operand.vmem [shape: f32[2,256], index: 1, kind: output, shape index: {}]
  %v2 = vld [vmem:[%s0] sm:$0x3]
  %3 = xla_tuple %v2
  %4 = xla_tuple %3
  %v5 = vxor.u32 %v2, 2147483648
  %6 = xla_tuple %v5
  %7 = vst [vmem:[%s1] sm:$0x3] %v5
  %s8 = scalar_lea.vmem %s0, 2
  %v9 = vld [vmem:[%s8] sm:$0x3]
  %10 = xla_tuple %v9
  %11 = xla_tuple %10
  %v12 = vxor.u32 %v9, 2147483648
  %13 = xla_tuple %v12
  %s14 = scalar_lea.vmem %s1, 2
  %15 = vst [vmem:[%s14] sm:$0x3] %v12

// kernel: multibox_loss.1
$region0: #{multibox_loss.1}
  #allocation0 [shape = 'u32[]', space=smem, size = 0x4, offset = 0x4, fixed_abs, tag = 'smem constant byte address 0x4 - core index']
  #allocation1 [shape = 'u32[144,128]{1,0:T(1,128)}', space=vmem, size = 0x12000, scoped, tag = 'internal scratch']
  %s0 = inlined_call_operand.vmem [shape: f32[2,8,5], index: 0, kind: input, shape index: {}]
  %s1 = inlined_call_operand.vmem [shape: f32[8,256], index: 1, kind: input, shape index: {}]
  %s2 = inlined_call_operand.vmem [shape: f32[2,8,256], index: 2, kind: input, shape index: {}]
  %s3 = inlined_call_operand.vmem [shape: f32[2,4,256], index: 3, kind: input, shape index: {}]
  %s4 = inlined_call_operand.vmem [shape: f32[2,1,256], index: 4, kind: output, shape index: {0}]
  %s5 = inlined_call_operand.vmem [shape: f32[2,1,256], index: 5, kind: output, shape index: {1}]
  %s6 = inlined_call_operand.vmem [shape: f32[2,1,256], index: 6, kind: output, shape index: {2}]
  %7 = xla_tuple %s4, %s5, %s6
  %s8 = sld [smem:[#allocation0]]
  $region65: #{multibox_loss.1} parent=0
    _
  %s10 = ssub.s32 1, %s8
  %s11 = scalar_select 0, %s10, %s8
  loop: start=0, step=1, limit=4
  $region2: #{multibox_loss.1} parent=0 // loop_pre_header
    _
  $region3: #{multibox_loss.1} parent=0 // loop_header
    %s13 = sphi 0, %s17
    %p14 = scmp.ge.s32.totalorder %s13, 4
    %s23 = sphi 0, %s25
    %s26 = sphi 0, %s23
    %s27 = sphi 0, %s26
    %s43 = sphi 0, %s27
    %s47 = sphi 0, %s47
    %s49 = sphi 0, %s47
    %s50 = sphi 0, %s49
    %s64 = sphi 0, %s50
    %s70 = sphi 0, %s72
    %s73 = sphi 0, %s70
    %s74 = sphi 0, %s73
    %s90 = sphi 0, %s74
    %s96 = sphi 0, %s98
    %s99 = sphi 0, %s96
    %s100 = sphi 0, %s99
    %s116 = sphi 0, %s100
    %s122 = sphi 0, %s124
    %s125 = sphi 0, %s122
    %s126 = sphi 0, %s125
    %s142 = sphi 0, %s126
    %s148 = sphi 0, %s150
    %s151 = sphi 0, %s148
    %s152 = sphi 0, %s151
    %s168 = sphi 0, %s152
    %s174 = sphi 0, %s176
    %s177 = sphi 0, %s174
    %s178 = sphi 0, %s177
    %s194 = sphi 0, %s178
  $region4: #{multibox_loss.1} parent=0 // loop_header_branch
    %16 = sbr.rel (%p14) target = $region8
  $region5: #{multibox_loss.1} parent=0 // loop_body
    %s18 = ssub.s32 %s13, 1
    %s19 = ssub.s32 %s13, 2
    %s20 = sadd.s32 %s13, 1
    %s21 = ssub.s32 %s13, %s20
    %p22 = scmp.eq.s32.totalorder %s21, 0
    %s24 = sadd.s32 %s23, 1
    %s25 = scalar_select %p22, %s23, %s24
    %p28 = pneg %p22
    %p29 = scmp.eq.s32.totalorder %s13, 1
    %p30 = por %p28, %p29
    %p31 = scmp.ne.s32.totalorder %s23, %s26
    %p32 = scmp.eq.s32.totalorder %s13, 0
    %p33 = por %p31, %p32
    %p34 = scmp.ne.s32.totalorder %s23, %s26
    %p35 = scmp.eq.s32.totalorder %s18, 1
    %p36 = por %p34, %p35
    %p37 = scmp.ne.s32.totalorder %s26, %s27
    %p38 = scmp.eq.s32.totalorder %s18, 0
    %p39 = por %p37, %p38
    %p40 = scmp.ne.s32.totalorder %s26, %s27
    %p41 = scmp.eq.s32.totalorder %s19, 1
    %p42 = por %p40, %p41
    %p44 = scmp.ne.s32.totalorder %s27, %s43
    %p45 = scmp.eq.s32.totalorder %s19, 0
    %p46 = por %p44, %p45
    %s48 = sadd.s32 %s47, 1
    %p51 = scmp.eq.s32.totalorder %s13, 1
    %p52 = scmp.ne.s32.totalorder %s47, %s49
    %p53 = scmp.eq.s32.totalorder %s13, 0
    %p54 = por %p52, %p53
    %p55 = scmp.ne.s32.totalorder %s47, %s49
    %p56 = scmp.eq.s32.totalorder %s18, 1
    %p57 = por %p55, %p56
    %p58 = scmp.ne.s32.totalorder %s49, %s50
    %p59 = scmp.eq.s32.totalorder %s18, 0
    %p60 = por %p58, %p59
    %p61 = scmp.ne.s32.totalorder %s49, %s50
    %p62 = scmp.eq.s32.totalorder %s19, 1
    %p63 = por %p61, %p62
    %p65 = scmp.ne.s32.totalorder %s50, %s64
    %p66 = scmp.eq.s32.totalorder %s19, 0
    %p67 = por %p65, %p66
    %s68 = ssub.s32 %s13, %s20
    %p69 = scmp.eq.s32.totalorder %s68, 0
    %s71 = sadd.s32 %s70, 1
    %s72 = scalar_select %p69, %s70, %s71
    %p75 = pneg %p69
    %p76 = scmp.eq.s32.totalorder %s13, 1
    %p77 = por %p75, %p76
    %p78 = scmp.ne.s32.totalorder %s70, %s73
    %p79 = scmp.eq.s32.totalorder %s13, 0
    %p80 = por %p78, %p79
    %p81 = scmp.ne.s32.totalorder %s70, %s73
    %p82 = scmp.eq.s32.totalorder %s18, 1
    %p83 = por %p81, %p82
    %p84 = scmp.ne.s32.totalorder %s73, %s74
    %p85 = scmp.eq.s32.totalorder %s18, 0
    %p86 = por %p84, %p85
    %p87 = scmp.ne.s32.totalorder %s73, %s74
    %p88 = scmp.eq.s32.totalorder %s19, 1
    %p89 = por %p87, %p88
    %p91 = scmp.ne.s32.totalorder %s74, %s90
    %p92 = scmp.eq.s32.totalorder %s19, 0
    %p93 = por %p91, %p92
    %s94 = ssub.s32 %s13, %s20
    %p95 = scmp.eq.s32.totalorder %s94, 0
    %s97 = sadd.s32 %s96, 1
    %s98 = scalar_select %p95, %s96, %s97
    %p101 = pneg %p95
    %p102 = scmp.eq.s32.totalorder %s13, 1
    %p103 = por %p101, %p102
    %p104 = scmp.ne.s32.totalorder %s96, %s99
    %p105 = scmp.eq.s32.totalorder %s13, 0
    %p106 = por %p104, %p105
    %p107 = scmp.ne.s32.totalorder %s96, %s99
    %p108 = scmp.eq.s32.totalorder %s18, 1
    %p109 = por %p107, %p108
    %p110 = scmp.ne.s32.totalorder %s99, %s100
    %p111 = scmp.eq.s32.totalorder %s18, 0
    %p112 = por %p110, %p111
    %p113 = scmp.ne.s32.totalorder %s99, %s100
    %p114 = scmp.eq.s32.totalorder %s19, 1
    %p115 = por %p113, %p114
    %p117 = scmp.ne.s32.totalorder %s100, %s116
    %p118 = scmp.eq.s32.totalorder %s19, 0
    %p119 = por %p117, %p118
    %s120 = ssub.s32 %s13, %s20
    %p121 = scmp.eq.s32.totalorder %s120, 0
    %s123 = sadd.s32 %s122, 1
    %s124 = scalar_select %p121, %s122, %s123
    %p127 = pneg %p121
    %p128 = scmp.eq.s32.totalorder %s13, 1
    %p129 = por %p127, %p128
    %p130 = scmp.ne.s32.totalorder %s122, %s125
    %p131 = scmp.eq.s32.totalorder %s13, 0
    %p132 = por %p130, %p131
    %p133 = scmp.ne.s32.totalorder %s122, %s125
    %p134 = scmp.eq.s32.totalorder %s18, 1
    %p135 = por %p133, %p134
    %p136 = scmp.ne.s32.totalorder %s125, %s126
    %p137 = scmp.eq.s32.totalorder %s18, 0
    %p138 = por %p136, %p137
    %p139 = scmp.ne.s32.totalorder %s125, %s126
    %p140 = scmp.eq.s32.totalorder %s19, 1
    %p141 = por %p139, %p140
    %p143 = scmp.ne.s32.totalorder %s126, %s142
    %p144 = scmp.eq.s32.totalorder %s19, 0
    %p145 = por %p143, %p144
    %s146 = ssub.s32 %s13, %s20
    %p147 = scmp.eq.s32.totalorder %s146, 0
    %s149 = sadd.s32 %s148, 1
    %s150 = scalar_select %p147, %s148, %s149
    %p153 = pneg %p147
    %p154 = scmp.eq.s32.totalorder %s13, 1
    %p155 = por %p153, %p154
    %p156 = scmp.ne.s32.totalorder %s148, %s151
    %p157 = scmp.eq.s32.totalorder %s13, 0
    %p158 = por %p156, %p157
    %p159 = scmp.ne.s32.totalorder %s148, %s151
    %p160 = scmp.eq.s32.totalorder %s18, 1
    %p161 = por %p159, %p160
    %p162 = scmp.ne.s32.totalorder %s151, %s152
    %p163 = scmp.eq.s32.totalorder %s18, 0
    %p164 = por %p162, %p163
    %p165 = scmp.ne.s32.totalorder %s151, %s152
    %p166 = scmp.eq.s32.totalorder %s19, 1
    %p167 = por %p165, %p166
    %p169 = scmp.ne.s32.totalorder %s152, %s168
    %p170 = scmp.eq.s32.totalorder %s19, 0
    %p171 = por %p169, %p170
    %s172 = ssub.s32 %s13, %s20
    %p173 = scmp.eq.s32.totalorder %s172, 0
    %s175 = sadd.s32 %s174, 1
    %s176 = scalar_select %p173, %s174, %s175
    %p179 = pneg %p173
    %p180 = scmp.eq.s32.totalorder %s13, 1
    %p181 = por %p179, %p180
    %p182 = scmp.ne.s32.totalorder %s174, %s177
    %p183 = scmp.eq.s32.totalorder %s13, 0
    %p184 = por %p182, %p183
    %p185 = scmp.ne.s32.totalorder %s174, %s177
    %p186 = scmp.eq.s32.totalorder %s18, 1
    %p187 = por %p185, %p186
    %p188 = scmp.ne.s32.totalorder %s177, %s178
    %p189 = scmp.eq.s32.totalorder %s18, 0
    %p190 = por %p188, %p189
    %p191 = scmp.ne.s32.totalorder %s177, %s178
    %p192 = scmp.eq.s32.totalorder %s19, 1
    %p193 = por %p191, %p192
    %p195 = scmp.ne.s32.totalorder %s178, %s194
    %p196 = scmp.eq.s32.totalorder %s19, 0
    %p197 = por %p195, %p196
    %p198 = scmp.le.s32.totalorder 1, %s13
    %p199 = scmp.lt.s32.totalorder %s13, 3
    %p200 = pnand %p198, %p199
    %p201 = pneg %p200
    // Predicated region
    $region9: #{multibox_loss.1} parent=5 // pred_check
      _
    $region10: #{multibox_loss.1} parent=5 // pred_check_branch
      %203 = sbr.rel (%p200) target = $region12
    $region11: #{multibox_loss.1} parent=5 // pred_region
      %s204 = ssub.s32 %s13, 1
      // Predicated region
      $region13: #{multibox_loss.1} parent=11 // pred_check
        %p205 = pneg %p60
      $region14: #{multibox_loss.1} parent=11 // pred_check_branch
        %207 = sbr.rel (%p205) target = $region16
      $region15: #{multibox_loss.1} parent=11 // pred_region
        _
      $region16: #{multibox_loss.1} parent=11 // pred_fallthru
        _
    $region12: #{multibox_loss.1} parent=5 // pred_fallthru
      _
    %p208 = scmp.lt.s32.totalorder %s13, 2
    // Predicated region
    $region17: #{multibox_loss.1} parent=5 // pred_check
      %p209 = pneg %p208
    $region18: #{multibox_loss.1} parent=5 // pred_check_branch
      %211 = sbr.rel (%p209) target = $region20
    $region19: #{multibox_loss.1} parent=5 // pred_region
      // Predicated region
      $region21: #{multibox_loss.1} parent=19 // pred_check
        %p212 = pneg %p33
      $region22: #{multibox_loss.1} parent=19 // pred_check_branch
        %214 = sbr.rel (%p212) target = $region24
      $region23: #{multibox_loss.1} parent=19 // pred_region
        %p215 = scmp.lt.s32.totalorder %s13, 1
        %s216 = scalar_select %p215, %s13, 1
        %s217 = smul.addr %s216, 8
        %s218 = scalar_lea.vmem %s0, %s217
      $region24: #{multibox_loss.1} parent=19 // pred_fallthru
        _
      // Predicated region
      $region25: #{multibox_loss.1} parent=19 // pred_check
        %p219 = pneg %p80
      $region26: #{multibox_loss.1} parent=19 // pred_check_branch
        %221 = sbr.rel (%p219) target = $region28
      $region27: #{multibox_loss.1} parent=19 // pred_region
        %p222 = scmp.lt.s32.totalorder %s13, 1
        %s223 = scalar_select %p222, %s13, 1
        %s224 = smul.addr %s223, 2
        %s225 = smul.addr %s224, 8
        %s226 = scalar_lea.vmem %s2, %s225
      $region28: #{multibox_loss.1} parent=19 // pred_fallthru
        _
      // Predicated region
      $region29: #{multibox_loss.1} parent=19 // pred_check
        %p227 = pneg %p106
      $region30: #{multibox_loss.1} parent=19 // pred_check_branch
        %229 = sbr.rel (%p227) target = $region32
      $region31: #{multibox_loss.1} parent=19 // pred_region
        %p230 = scmp.lt.s32.totalorder %s13, 1
        %s231 = scalar_select %p230, %s13, 1
        %s232 = smul.addr %s231, 2
        %s233 = smul.addr %s232, 4
        %s234 = scalar_lea.vmem %s3, %s233
      $region32: #{multibox_loss.1} parent=19 // pred_fallthru
        _
    $region20: #{multibox_loss.1} parent=5 // pred_fallthru
      _
    %p235 = scmp.le.s32.totalorder 1, %s13
    %p236 = scmp.lt.s32.totalorder %s13, 3
    %p237 = pnand %p235, %p236
    %p238 = pneg %p237
    // Predicated region
    $region33: #{multibox_loss.1} parent=5 // pred_check
      _
    $region34: #{multibox_loss.1} parent=5 // pred_check_branch
      %240 = sbr.rel (%p237) target = $region36
    $region35: #{multibox_loss.1} parent=5 // pred_region
      %s241 = ssub.s32 %s13, 1
      %p242 = scmp.lt.s32.totalorder %s18, 1
      %s243 = scalar_select %p242, %s18, 1
      %s244 = smul.addr %s243, 8
      %s245 = scalar_lea.vmem %s0, %s244
      %p246 = pneg %p39
      %p247 = pneg %p36
      %p248 = pneg %p60
      %p249 = pneg %p57
      %p250 = scmp.lt.s32.totalorder %s18, 1
      %s251 = scalar_select %p250, %s18, 1
      %s252 = smul.addr %s251, 2
      %s253 = smul.addr %s252, 8
      %s254 = scalar_lea.vmem %s2, %s253
      %p255 = pneg %p86
      %p256 = pneg %p83
      %p257 = scmp.lt.s32.totalorder %s18, 1
      %s258 = scalar_select %p257, %s18, 1
      %s259 = smul.addr %s258, 2
      %s260 = smul.addr %s259, 4
      %s261 = scalar_lea.vmem %s3, %s260
      %p262 = pneg %p112
      %p263 = pneg %p109
      %p264 = pneg %p138
      %p265 = pneg %p135
      %p266 = scmp.lt.s32.totalorder %s18, 1
      %s267 = scalar_select %p266, %s18, 1
      %s268 = smul.addr %s267, 2
      %s269 = scalar_lea.vmem %s4, %s268
      %p270 = pneg %p164
      %p271 = pneg %p161
      %p272 = scmp.lt.s32.totalorder %s18, 1
      %s273 = scalar_select %p272, %s18, 1
      %s274 = smul.addr %s273, 2
      %s275 = scalar_lea.vmem %s5, %s274
      %p276 = pneg %p190
      %p277 = pneg %p187
      %p278 = scmp.lt.s32.totalorder %s18, 1
      %s279 = scalar_select %p278, %s18, 1
      %s280 = smul.addr %s279, 2
      %s281 = scalar_lea.vmem %s6, %s280
      %p282 = scmp.lt.s32.totalorder %s18, 1
      %s283 = scalar_select %p282, %s18, 1
      %s284 = smul.addr %s283, 8
      %s285 = scalar_lea.vmem %s0, %s284
      %p286 = scmp.lt.s32.totalorder %s18, 1
      %s287 = scalar_select %p286, %s18, 1
      %s288 = smul.addr %s287, 2
      %s289 = smul.addr %s288, 8
      %s290 = scalar_lea.vmem %s2, %s289
      %p291 = scmp.lt.s32.totalorder %s18, 1
      %s292 = scalar_select %p291, %s18, 1
      %s293 = smul.addr %s292, 2
      %s294 = smul.addr %s293, 4
      %s295 = scalar_lea.vmem %s3, %s294
      %p296 = scmp.lt.s32.totalorder %s18, 1
      %s297 = scalar_select %p296, %s18, 1
      %s298 = smul.addr %s297, 2
      %s299 = scalar_lea.vmem %s4, %s298
      %p300 = scmp.lt.s32.totalorder %s18, 1
      %s301 = scalar_select %p300, %s18, 1
      %s302 = smul.addr %s301, 2
      %s303 = scalar_lea.vmem %s5, %s302
      %p304 = scmp.lt.s32.totalorder %s18, 1
      %s305 = scalar_select %p304, %s18, 1
      %s306 = smul.addr %s305, 2
      %s307 = scalar_lea.vmem %s6, %s306
      %v308 = vld [vmem:[%s285] sm:$0xff]
      %v309 = vld [vmem:[%s1] sm:$0xff]
      %v310 = vld [vmem:[%s1 + $0x8] sm:$0xff]
      %v311 = vld [vmem:[%s290] sm:$0xff]
      %v312 = vld [vmem:[%s290 + $0x8] sm:$0xff]
      %v313 = vld [vmem:[%s295] sm:$0xff]
      %315 = vset.pattern.permute.xlu0 0
      %316 = vperm.xlu0 %315, %v308
      %v317 = vpop.permute.xlu0 %316
      %v319 = vlaneseq
      %v320 = vshrl.u32 %v319, 7
      %v321 = vsub.s32 0, %v320
      %v322 = vrot.slane %v309, %v321
      %v323 = vlaneseq
      %v324 = vshrl.u32 %v323, 7
      %v325 = vsub.s32 0, %v324
      %v326 = vrot.slane %v310, %v325
      %v327 = vmax.f32 %v317, %v322
      %v328 = vmax.f32 %v317, %v326
      %329 = vset.pattern.permute.xlu0 1
      %330 = vperm.xlu0 %329, %v308
      %v331 = vpop.permute.xlu0 %330
      %v333 = vlaneseq
      %v334 = vshrl.u32 %v333, 7
      %v335 = vsub.s32 1, %v334
      %v336 = vrot.slane %v309, %v335
      %v337 = vlaneseq
      %v338 = vshrl.u32 %v337, 7
      %v339 = vsub.s32 1, %v338
      %v340 = vrot.slane %v310, %v339
      %v341 = vmax.f32 %v331, %v336
      %v342 = vmax.f32 %v331, %v340
      %343 = vset.pattern.permute.xlu0 2
      %344 = vperm.xlu0 %343, %v308
      %v345 = vpop.permute.xlu0 %344
      %v347 = vlaneseq
      %v348 = vshrl.u32 %v347, 7
      %v349 = vsub.s32 2, %v348
      %v350 = vrot.slane %v309, %v349
      %v351 = vlaneseq
      %v352 = vshrl.u32 %v351, 7
      %v353 = vsub.s32 2, %v352
      %v354 = vrot.slane %v310, %v353
      %v355 = vmin.f32 %v345, %v350
      %v356 = vmin.f32 %v345, %v354
      %357 = vset.pattern.permute.xlu0 3
      %358 = vperm.xlu0 %357, %v308
      %v359 = vpop.permute.xlu0 %358
      %v361 = vlaneseq
      %v362 = vshrl.u32 %v361, 7
      %v363 = vsub.s32 3, %v362
      %v364 = vrot.slane %v309, %v363
      %v365 = vlaneseq
      %v366 = vshrl.u32 %v365, 7
      %v367 = vsub.s32 3, %v366
      %v368 = vrot.slane %v310, %v367
      %v369 = vmin.f32 %v359, %v364
      %v370 = vmin.f32 %v359, %v368
      %v371 = vsub.f32 %v355, %v327
      %v372 = vsub.f32 %v356, %v328
      %v373 = vmax.f32 %v371, 0.0
      %v374 = vmax.f32 %v372, 0.0
      %v375 = vsub.f32 %v369, %v341
      %v376 = vsub.f32 %v370, %v342
      %v377 = vmax.f32 %v375, 0.0
      %v378 = vmax.f32 %v376, 0.0
      %v379 = vmul.f32 %v373, %v377
      %v380 = vmul.f32 %v374, %v378
      %381 = vrot.lane.b32.xlu0 %v308, 2
      %v382 = vpop.permute.xlu0 %381
      %v384 = vsub.f32 %v308, %v382
      %386 = vrot.lane.b32.xlu0 %v384, 127
      %v387 = vpop.permute.xlu0 %386
      %v389 = vmul.f32 %v384, %v387
      %v392 = vrot.slane %v309, 6
      %v393 = vrot.slane %v310, 6
      %v396 = vsub.f32 %v309, %v392
      %v397 = vsub.f32 %v310, %v393
      %v400 = vrot.slane %v396, 1
      %v401 = vrot.slane %v397, 1
      %v404 = vmul.f32 %v396, %v400
      %v405 = vmul.f32 %v397, %v401
      %407 = vset.pattern.permute.xlu0 2
      %408 = vperm.xlu0 %407, %v389
      %v409 = vpop.permute.xlu0 %408
      %v411 = vlaneseq
      %v412 = vshrl.u32 %v411, 7
      %v413 = vsub.s32 2, %v412
      %v414 = vrot.slane %v404, %v413
      %v415 = vlaneseq
      %v416 = vshrl.u32 %v415, 7
      %v417 = vsub.s32 2, %v416
      %v418 = vrot.slane %v405, %v417
      %v419 = vadd.f32 %v409, %v414
      %v420 = vadd.f32 %v409, %v418
      %v421 = vsub.f32 %v419, %v379
      %v422 = vsub.f32 %v420, %v380
      %v423 = vmax.f32 %v421, 1e-10
      %v424 = vmax.f32 %v422, 1e-10
      %v425 = vrcp.pop %v423
      %v426 = vrcp.pop %v424
      %v427 = vmul.f32 %v379, %v425
      %v428 = vmul.f32 %v380, %v426
      %v429 = vlaneseq
      %v430 = vand.u32 %v429, 127
      %v431 = vadd.s32 %v430, 128
      %v432 = vmax.f32 %v427, %v428
      %433 = vmax.xlane.f32.xlu0 %v432
      %v434 = vpop.xlane.xlu0 %433
      %vm435 = vcmp.ge.f32.partialorder %v427, %v434
      %vm436 = vcmp.ge.f32.partialorder %v428, %v434
      %v437 = vsel %vm435, %v430, 256
      %v438 = vsel %vm436, %v431, 256
      %vm439 = vcmp.lt.s32.totalorder %v437, %v438
      %v440 = vsel %vm439, %v437, %v438
      %v441 = vand.u32 %v440, 65535
      %v442 = vshra.s32 %v440, 16
      %v443 = vcvt.s32.f32 %v441
      %v444 = vcvt.s32.f32 %v442
      %445 = vmin.xlane.f32.xlu0 %v444
      %v446 = vpop.xlane.xlu0 %445
      %vm447 = vcmp.eq.f32.partialorder %v444, %v446
      %v448 = vsel %vm447, %v443, inf
      %449 = vmin.xlane.f32.xlu0 %v448
      %v450 = vpop.xlane.xlu0 %449
      %v451 = vcvt.f32.s32 %v450
      %v452 = vcvt.f32.s32 %v446
      %v453 = vshll.u32 %v452, 16
      %v454 = vadd.s32 %v453, %v451
      %v455 = vlaneseq
      %v456 = vshrl.u32 %v455, 7
      %v457 = vrot.slane %v427, 4
      %v458 = vmax.f32 %v427, %v457
      %v459 = vrot.slane %v458, 2
      %v460 = vmax.f32 %v458, %v459
      %v461 = vrot.slane %v460, 1
      %v462 = vmax.f32 %v460, %v461
      %v463 = vrot.slane %v428, 4
      %v464 = vmax.f32 %v428, %v463
      %v465 = vrot.slane %v464, 2
      %v466 = vmax.f32 %v464, %v465
      %v467 = vrot.slane %v466, 1
      %v468 = vmax.f32 %v466, %v467
      %vm469 = vcmp.ge.f32.partialorder %v427, %v462
      %vm470 = vcmp.ge.f32.partialorder %v428, %v468
      %v471 = vsel %vm469, %v456, 8
      %v472 = vsel %vm470, %v456, 8
      %v473 = vrot.slane %v471, 4
      %vm474 = vcmp.lt.s32.totalorder %v471, %v473
      %v475 = vsel %vm474, %v471, %v473
      %v476 = vrot.slane %v475, 2
      %vm477 = vcmp.lt.s32.totalorder %v475, %v476
      %v478 = vsel %vm477, %v475, %v476
      %v479 = vrot.slane %v478, 1
      %vm480 = vcmp.lt.s32.totalorder %v478, %v479
      %v481 = vsel %vm480, %v478, %v479
      %v482 = vrot.slane %v472, 4
      %vm483 = vcmp.lt.s32.totalorder %v472, %v482
      %v484 = vsel %vm483, %v472, %v482
      %v485 = vrot.slane %v484, 2
      %vm486 = vcmp.lt.s32.totalorder %v484, %v485
      %v487 = vsel %vm486, %v484, %v485
      %v488 = vrot.slane %v487, 1
      %vm489 = vcmp.lt.s32.totalorder %v487, %v488
      %v490 = vsel %vm489, %v487, %v488
      %vm491 = vcmp.eq.s32.totalorder %v454, %v430
      %vm492 = vcmp.eq.s32.totalorder %v454, %v431
      %v493 = vsel %vm491, 1, 0
      %v494 = vsel %vm492, 1, 0
      %v495 = vrot.slane %v493, 4
      %vm496 = vcmp.gt.s32.totalorder %v493, %v495
      %v497 = vsel %vm496, %v493, %v495
      %v498 = vrot.slane %v497, 2
      %vm499 = vcmp.gt.s32.totalorder %v497, %v498
      %v500 = vsel %vm499, %v497, %v498
      %v501 = vrot.slane %v500, 1
      %vm502 = vcmp.gt.s32.totalorder %v500, %v501
      %v503 = vsel %vm502, %v500, %v501
      %v504 = vrot.slane %v494, 4
      %vm505 = vcmp.gt.s32.totalorder %v494, %v504
      %v506 = vsel %vm505, %v494, %v504
      %v507 = vrot.slane %v506, 2
      %vm508 = vcmp.gt.s32.totalorder %v506, %v507
      %v509 = vsel %vm508, %v506, %v507
      %v510 = vrot.slane %v509, 1
      %vm511 = vcmp.gt.s32.totalorder %v509, %v510
      %v512 = vsel %vm511, %v509, %v510
      %vm513 = vcmp.gt.s32.totalorder %v493, 0
      %vm514 = vcmp.gt.s32.totalorder %v494, 0
      %v515 = vsel %vm513, %v456, 4294967295
      %v516 = vsel %vm514, %v456, 4294967295
      %v517 = vrot.slane %v515, 4
      %vm518 = vcmp.gt.s32.totalorder %v515, %v517
      %v519 = vsel %vm518, %v515, %v517
      %v520 = vrot.slane %v519, 2
      %vm521 = vcmp.gt.s32.totalorder %v519, %v520
      %v522 = vsel %vm521, %v519, %v520
      %v523 = vrot.slane %v522, 1
      %vm524 = vcmp.gt.s32.totalorder %v522, %v523
      %v525 = vsel %vm524, %v522, %v523
      %v526 = vrot.slane %v516, 4
      %vm527 = vcmp.gt.s32.totalorder %v516, %v526
      %v528 = vsel %vm527, %v516, %v526
      %v529 = vrot.slane %v528, 2
      %vm530 = vcmp.gt.s32.totalorder %v528, %v529
      %v531 = vsel %vm530, %v528, %v529
      %v532 = vrot.slane %v531, 1
      %vm533 = vcmp.gt.s32.totalorder %v531, %v532
      %v534 = vsel %vm533, %v531, %v532
      %vm535 = vcmp.gt.s32.totalorder %v503, 0
      %vm536 = vcmp.gt.s32.totalorder %v512, 0
      %v537 = vsel %vm535, 2.0, %v462
      %v538 = vsel %vm536, 2.0, %v468
      %v539 = vsel %vm535, %v525, %v481
      %v540 = vsel %vm536, %v534, %v490
      %vm541 = vcmp.eq.s32.totalorder %v539, %v456
      %vm542 = vcmp.eq.s32.totalorder %v540, %v456
      %v543 = vsel %vm541, 1, 0
      %v544 = vsel %vm542, 1, 0
      %v545 = vcvt.s32.f32 %v543
      %v546 = vcvt.s32.f32 %v544
      %v547 = vmul.f32 %v545, %v317
      %v548 = vmul.f32 %v546, %v317
      %v549 = vrot.slane %v547, 4
      %v550 = vadd.f32 %v547, %v549
      %v551 = vrot.slane %v550, 2
      %v552 = vadd.f32 %v550, %v551
      %v553 = vrot.slane %v552, 1
      %v554 = vadd.f32 %v552, %v553
      %v555 = vrot.slane %v548, 4
      %v556 = vadd.f32 %v548, %v555
      %v557 = vrot.slane %v556, 2
      %v558 = vadd.f32 %v556, %v557
      %v559 = vrot.slane %v558, 1
      %v560 = vadd.f32 %v558, %v559
      %v561 = vmul.f32 %v545, %v331
      %v562 = vmul.f32 %v546, %v331
      %v563 = vrot.slane %v561, 4
      %v564 = vadd.f32 %v561, %v563
      %v565 = vrot.slane %v564, 2
      %v566 = vadd.f32 %v564, %v565
      %v567 = vrot.slane %v566, 1
      %v568 = vadd.f32 %v566, %v567
      %v569 = vrot.slane %v562, 4
      %v570 = vadd.f32 %v562, %v569
      %v571 = vrot.slane %v570, 2
      %v572 = vadd.f32 %v570, %v571
      %v573 = vrot.slane %v572, 1
      %v574 = vadd.f32 %v572, %v573
      %v575 = vmul.f32 %v545, %v345
      %v576 = vmul.f32 %v546, %v345
      %v577 = vrot.slane %v575, 4
      %v578 = vadd.f32 %v575, %v577
      %v579 = vrot.slane %v578, 2
      %v580 = vadd.f32 %v578, %v579
      %v581 = vrot.slane %v580, 1
      %v582 = vadd.f32 %v580, %v581
      %v583 = vrot.slane %v576, 4
      %v584 = vadd.f32 %v576, %v583
      %v585 = vrot.slane %v584, 2
      %v586 = vadd.f32 %v584, %v585
      %v587 = vrot.slane %v586, 1
      %v588 = vadd.f32 %v586, %v587
      %v589 = vmul.f32 %v545, %v359
      %v590 = vmul.f32 %v546, %v359
      %v591 = vrot.slane %v589, 4
      %v592 = vadd.f32 %v589, %v591
      %v593 = vrot.slane %v592, 2
      %v594 = vadd.f32 %v592, %v593
      %v595 = vrot.slane %v594, 1
      %v596 = vadd.f32 %v594, %v595
      %v597 = vrot.slane %v590, 4
      %v598 = vadd.f32 %v590, %v597
      %v599 = vrot.slane %v598, 2
      %v600 = vadd.f32 %v598, %v599
      %v601 = vrot.slane %v600, 1
      %v602 = vadd.f32 %v600, %v601
      %603 = vset.pattern.permute.xlu0 4
      %604 = vperm.xlu0 %603, %v308
      %v605 = vpop.permute.xlu0 %604
      %v607 = vmul.f32 %v545, %v605
      %v608 = vmul.f32 %v546, %v605
      %v609 = vrot.slane %v607, 4
      %v610 = vadd.f32 %v607, %v609
      %v611 = vrot.slane %v610, 2
      %v612 = vadd.f32 %v610, %v611
      %v613 = vrot.slane %v612, 1
      %v614 = vadd.f32 %v612, %v613
      %v615 = vrot.slane %v608, 4
      %v616 = vadd.f32 %v608, %v615
      %v617 = vrot.slane %v616, 2
      %v618 = vadd.f32 %v616, %v617
      %v619 = vrot.slane %v618, 1
      %v620 = vadd.f32 %v618, %v619
      %v621 = vadd.f32 %v614, 1.0
      %v622 = vadd.f32 %v620, 1.0
      %v623 = vcvt.f32.s32.to.zero.pseudo %v621
      %v624 = vcvt.f32.s32.to.zero.pseudo %v622
      %vm625 = vcmp.lt.f32.partialorder %v537, 0.5
      %vm626 = vcmp.lt.f32.partialorder %v538, 0.5
      %v627 = vsel %vm625, 0, %v623
      %v628 = vsel %vm626, 0, %v624
      %vm629 = vcmp.gt.s32.totalorder %v627, 0
      %vm630 = vcmp.gt.s32.totalorder %v628, 0
      %v631 = vadd.f32 %v554, %v582
      %v632 = vadd.f32 %v560, %v588
      %v633 = vmul.f32 %v631, 0.5
      %v634 = vmul.f32 %v632, 0.5
      %v635 = vadd.f32 %v568, %v596
      %v636 = vadd.f32 %v574, %v602
      %v637 = vmul.f32 %v635, 0.5
      %v638 = vmul.f32 %v636, 0.5
      %v639 = vsub.f32 %v582, %v554
      %v640 = vsub.f32 %v588, %v560
      %v641 = vmax.f32 %v639, 1e-06
      %v642 = vmax.f32 %v640, 1e-06
      %v643 = vsub.f32 %v596, %v568
      %v644 = vsub.f32 %v602, %v574
      %v645 = vmax.f32 %v643, 1e-06
      %v646 = vmax.f32 %v644, 1e-06
      %v647 = vsub.f32 %v633, %v309
      %v648 = vsub.f32 %v634, %v310
      %v649 = vmul.f32 %v309, 0.1
      %v650 = vmul.f32 %v310, 0.1
      %v653 = vrot.slane %v649, 2
      %v654 = vrot.slane %v650, 2
      %v657 = vrcp.pop %v653
      %v658 = vmul.f32 %v647, %v657
      %v659 = vrcp.pop %v654
      %v660 = vmul.f32 %v648, %v659
      %v661 = vsub.f32 %v637, %v309
      %v662 = vsub.f32 %v638, %v310
      %v663 = vmul.f32 %v661, %v657
      %v664 = vmul.f32 %v662, %v659
      %v665 = vrcp.pop %v309
      %v666 = vmul.f32 %v641, %v665
      %v667 = vrcp.pop %v310
      %v668 = vmul.f32 %v642, %v667
      %v669 = vlog2.pop %v666
      %v670 = vmul.f32 %v669, 0.6931472
      %v671 = vlog2.pop %v668
      %v672 = vmul.f32 %v671, 0.6931472
      %v673 = vrcp.pop 0.2
      %v674 = vmul.f32 %v670, %v673
      %v675 = vmul.f32 %v672, %v673
      %v676 = vmul.f32 %v645, %v665
      %v677 = vmul.f32 %v646, %v667
      %v678 = vlog2.pop %v676
      %v679 = vmul.f32 %v678, 0.6931472
      %v680 = vlog2.pop %v677
      %v681 = vmul.f32 %v680, 0.6931472
      %v682 = vmul.f32 %v679, %v673
      %v683 = vmul.f32 %v681, %v673
      %v686 = vcombine.high %v658, %v660
      %v688 = vsub.f32 %v313, %v686
      %v689 = vand.u32 2147483647, %v688
      %vm690 = vcmp.lt.f32.partialorder %v689, 1.0
      %v691 = vmul.f32 %v689, 0.5
      %v692 = vmul.f32 %v691, %v689
      %v693 = vsub.f32 %v689, 0.5
      %v694 = vsel %vm690, %v692, %v693
      %v697 = vcombine.high %v663, %v664
      %v699 = vsub.f32 %v313, %v697
      %v700 = vand.u32 2147483647, %v699
      %vm701 = vcmp.lt.f32.partialorder %v700, 1.0
      %v702 = vmul.f32 %v700, 0.5
      %v703 = vmul.f32 %v702, %v700
      %v704 = vsub.f32 %v700, 0.5
      %v705 = vsel %vm701, %v703, %v704
      %v707 = vrot.slane %v705, 5
      %v708 = vrot.slane %v707, 4
      %v710 = vadd.f32 %v694, %v708
      %v713 = vcombine.high %v674, %v675
      %v715 = vsub.f32 %v313, %v713
      %v716 = vand.u32 2147483647, %v715
      %vm717 = vcmp.lt.f32.partialorder %v716, 1.0
      %v718 = vmul.f32 %v716, 0.5
      %v719 = vmul.f32 %v718, %v716
      %v720 = vsub.f32 %v716, 0.5
      %v721 = vsel %vm717, %v719, %v720
      %v723 = vrot.slane %v721, 6
      %v724 = vrot.slane %v723, 4
      %v726 = vadd.f32 %v710, %v724
      %v729 = vcombine.high %v682, %v683
      %v731 = vsub.f32 %v313, %v729
      %v732 = vand.u32 2147483647, %v731
      %vm733 = vcmp.lt.f32.partialorder %v732, 1.0
      %v734 = vmul.f32 %v732, 0.5
      %v735 = vmul.f32 %v734, %v732
      %v736 = vsub.f32 %v732, 0.5
      %v737 = vsel %vm733, %v735, %v736
      %v739 = vrot.slane %v737, 7
      %v740 = vrot.slane %v739, 4
      %v742 = vadd.f32 %v726, %v740
      %v744 = vlaneseq
      %v745 = vshrl.u32 %v744, 7
      %v746 = vsub.s32 0, %v745
      %v747 = vrot.slane %v742, %v746
      %v748 = vlaneseq
      %v749 = vshrl.u32 %v748, 7
      %v750 = vsub.s32 4, %v749
      %v751 = vrot.slane %v742, %v750
      %v754 = vsel %vm629, %v747, 0.0
      %v755 = vsel %vm630, %v751, 0.0
      %v756 = vrot.slane %v311, 4
      %v757 = vmax.f32 %v311, %v756
      %v758 = vrot.slane %v757, 2
      %v759 = vmax.f32 %v757, %v758
      %v760 = vrot.slane %v759, 1
      %v761 = vmax.f32 %v759, %v760
      %v762 = vrot.slane %v312, 4
      %v763 = vmax.f32 %v312, %v762
      %v764 = vrot.slane %v763, 2
      %v765 = vmax.f32 %v763, %v764
      %v766 = vrot.slane %v765, 1
      %v767 = vmax.f32 %v765, %v766
      %v768 = vsub.f32 %v311, %v761
      %v769 = vsub.f32 %v312, %v767
      %v770 = vmul.f32 %v768, 1.442695
      %v771 = vpow.pop %v770
      %v772 = vmul.f32 %v769, 1.442695
      %v773 = vpow.pop %v772
      %v774 = vrot.slane %v771, 4
      %v775 = vadd.f32 %v771, %v774
      %v776 = vrot.slane %v775, 2
      %v777 = vadd.f32 %v775, %v776
      %v778 = vrot.slane %v777, 1
      %v779 = vadd.f32 %v777, %v778
      %v780 = vrot.slane %v773, 4
      %v781 = vadd.f32 %v773, %v780
      %v782 = vrot.slane %v781, 2
      %v783 = vadd.f32 %v781, %v782
      %v784 = vrot.slane %v783, 1
      %v785 = vadd.f32 %v783, %v784
      %v786 = vlog2.pop %v779
      %v787 = vmul.f32 %v786, 0.6931472
      %v788 = vlog2.pop %v785
      %v789 = vmul.f32 %v788, 0.6931472
      %v790 = vadd.f32 %v787, %v761
      %v791 = vadd.f32 %v789, %v767
      %vm792 = vcmp.eq.s32.totalorder %v627, %v456
      %vm793 = vcmp.eq.s32.totalorder %v628, %v456
      %v794 = vsel %vm792, %v311, 0.0
      %v795 = vsel %vm793, %v312, 0.0
      %v796 = vrot.slane %v794, 4
      %v797 = vadd.f32 %v794, %v796
      %v798 = vrot.slane %v797, 2
      %v799 = vadd.f32 %v797, %v798
      %v800 = vrot.slane %v799, 1
      %v801 = vadd.f32 %v799, %v800
      %v802 = vrot.slane %v795, 4
      %v803 = vadd.f32 %v795, %v802
      %v804 = vrot.slane %v803, 2
      %v805 = vadd.f32 %v803, %v804
      %v806 = vrot.slane %v805, 1
      %v807 = vadd.f32 %v805, %v806
      %v808 = vsub.f32 %v790, %v801
      %v809 = vsub.f32 %v791, %v807
      %v812 = vcombine.low %v808, %v809
      %v814 = vunpack.c.l.s4 1966171168
      %v815 = vunpack.c.0.s8 %v814
      %v816 = vlaneseq
      %v817 = vshrl.u32 %v816, 7
      %v818 = vsub.s32 %v815, %v817
      %v819 = vrot.slane %v812, %v818
      %v821 = vunpack.c.l.s4 1966171168
      %v822 = vunpack.c.0.s8 %v821
      %v823 = vlaneseq
      %v824 = vshrl.u32 %v823, 7
      %v825 = vsub.s32 %v822, %v824
      %v826 = vrot.slane %v819, %v825
      %v828 = vlaneseq
      %vm829 = vcmp.ge.s32.totalorder %v828, 0
      %vm830 = vcmp.lt.s32.totalorder %v828, 256
      %vm831 = vmand %vm829, %vm830
      %832 = vst.msk [vmem:[%s299] sm:$0x3] %vm831, %v826
      %v833 = vsel %vm629, 1, 0
      %v834 = vsel %vm630, 1, 0
      %v835 = vcvt.s32.f32 %v833
      %v836 = vcvt.s32.f32 %v834
      %v839 = vcombine.low %v835, %v836
      %v841 = vunpack.c.l.s4 1966171168
      %v842 = vunpack.c.0.s8 %v841
      %v843 = vlaneseq
      %v844 = vshrl.u32 %v843, 7
      %v845 = vsub.s32 %v842, %v844
      %v846 = vrot.slane %v839, %v845
      %v848 = vunpack.c.l.s4 1966171168
      %v849 = vunpack.c.0.s8 %v848
      %v850 = vlaneseq
      %v851 = vshrl.u32 %v850, 7
      %v852 = vsub.s32 %v849, %v851
      %v853 = vrot.slane %v846, %v852
      %855 = vst.msk [vmem:[%s303] sm:$0x3] %vm831, %v853
      %v858 = vcombine.low %v754, %v755
      %v860 = vunpack.c.l.s4 1966171168
      %v861 = vunpack.c.0.s8 %v860
      %v862 = vlaneseq
      %v863 = vshrl.u32 %v862, 7
      %v864 = vsub.s32 %v861, %v863
      %v865 = vrot.slane %v858, %v864
      %v867 = vunpack.c.l.s4 1966171168
      %v868 = vunpack.c.0.s8 %v867
      %v869 = vlaneseq
      %v870 = vshrl.u32 %v869, 7
      %v871 = vsub.s32 %v868, %v870
      %v872 = vrot.slane %v865, %v871
      %874 = vst.msk [vmem:[%s307] sm:$0x3] %vm831, %v872
      %p875 = scmp.lt.s32.totalorder %s18, 1
      %s876 = scalar_select %p875, %s18, 1
      %s877 = smul.addr %s876, 2
      %s878 = scalar_lea.vmem %s4, %s877
      %p879 = scmp.lt.s32.totalorder %s18, 1
      %s880 = scalar_select %p879, %s18, 1
      %s881 = smul.addr %s880, 2
      %s882 = scalar_lea.vmem %s5, %s881
      %p883 = scmp.lt.s32.totalorder %s18, 1
      %s884 = scalar_select %p883, %s18, 1
      %s885 = smul.addr %s884, 2
      %s886 = scalar_lea.vmem %s6, %s885
      // Predicated region
      $region37: #{multibox_loss.1} parent=35 // pred_check
        %p887 = pneg %p135
      $region38: #{multibox_loss.1} parent=35 // pred_check_branch
        %889 = sbr.rel (%p887) target = $region40
      $region39: #{multibox_loss.1} parent=35 // pred_region
        _
      $region40: #{multibox_loss.1} parent=35 // pred_fallthru
        _
      // Predicated region
      $region41: #{multibox_loss.1} parent=35 // pred_check
        %p890 = pneg %p161
      $region42: #{multibox_loss.1} parent=35 // pred_check_branch
        %892 = sbr.rel (%p890) target = $region44
      $region43: #{multibox_loss.1} parent=35 // pred_region
        _
      $region44: #{multibox_loss.1} parent=35 // pred_fallthru
        _
      // Predicated region
      $region45: #{multibox_loss.1} parent=35 // pred_check
        %p893 = pneg %p187
      $region46: #{multibox_loss.1} parent=35 // pred_check_branch
        %895 = sbr.rel (%p893) target = $region48
      $region47: #{multibox_loss.1} parent=35 // pred_region
        _
      $region48: #{multibox_loss.1} parent=35 // pred_fallthru
        _
    $region36: #{multibox_loss.1} parent=5 // pred_fallthru
      _
    %p896 = scmp.le.s32.totalorder 2, %s13
    // Predicated region
    $region49: #{multibox_loss.1} parent=5 // pred_check
      %p897 = pneg %p896
    $region50: #{multibox_loss.1} parent=5 // pred_check_branch
      %899 = sbr.rel (%p897) target = $region52
    $region51: #{multibox_loss.1} parent=5 // pred_region
      %s900 = ssub.s32 %s13, 2
      // Predicated region
      $region53: #{multibox_loss.1} parent=51 // pred_check
        %p901 = pneg %p141
      $region54: #{multibox_loss.1} parent=51 // pred_check_branch
        %903 = sbr.rel (%p901) target = $region56
      $region55: #{multibox_loss.1} parent=51 // pred_region
        %p904 = scmp.lt.s32.totalorder %s19, 1
        %s905 = scalar_select %p904, %s19, 1
        %s906 = smul.addr %s905, 2
        %s907 = scalar_lea.vmem %s4, %s906
      $region56: #{multibox_loss.1} parent=51 // pred_fallthru
        _
      // Predicated region
      $region57: #{multibox_loss.1} parent=51 // pred_check
        %p908 = pneg %p167
      $region58: #{multibox_loss.1} parent=51 // pred_check_branch
        %910 = sbr.rel (%p908) target = $region60
      $region59: #{multibox_loss.1} parent=51 // pred_region
        %p911 = scmp.lt.s32.totalorder %s19, 1
        %s912 = scalar_select %p911, %s19, 1
        %s913 = smul.addr %s912, 2
        %s914 = scalar_lea.vmem %s5, %s913
      $region60: #{multibox_loss.1} parent=51 // pred_fallthru
        _
      // Predicated region
      $region61: #{multibox_loss.1} parent=51 // pred_check
        %p915 = pneg %p193
      $region62: #{multibox_loss.1} parent=51 // pred_check_branch
        %917 = sbr.rel (%p915) target = $region64
      $region63: #{multibox_loss.1} parent=51 // pred_region
        %p918 = scmp.lt.s32.totalorder %s19, 1
        %s919 = scalar_select %p918, %s19, 1
        %s920 = smul.addr %s919, 2
        %s921 = scalar_lea.vmem %s6, %s920
      $region64: #{multibox_loss.1} parent=51 // pred_fallthru
        _
    $region52: #{multibox_loss.1} parent=5 // pred_fallthru
      _
  $region6: #{multibox_loss.1} parent=0 // loop_footer
    %s17 = sadd.s32 1, %s13
  $region7: #{multibox_loss.1} parent=0 // loop_footer_branch
    %12 = sbr.rel target = $region3
  $region8: #{multibox_loss.1} parent=0 // loop_exit
    _

</llo_original>
